<compile_context>
chip_gen: v6e
topology: v6e:2x2x1
jax: 0.10.0
libtpu: 0.0.40
codegen_flags: <defaults>
</compile_context>

<pallas_src>
import jax
import jax.numpy as jnp
from jax.experimental import pallas as pl
from jax.experimental.pallas import tpu as pltpu


def _lstm_t0_kernel(ids_ref, emb_ref, w_ref, b_ref, out_ref, x0_ref):
    """One LSTM cell step from zero state == output_unpacked[:, 0, :].

    ids_ref : [B, L]    int32, SMEM  (only column 0 is read)
    emb_ref : [V, 1, E] f32,   VMEM  (full embedding table, leading-axis gather)
    w_ref   : [E, 3H]   f32,   VMEM  (W_ih^T columns for gates i, g, o)
    b_ref   : [1, 3H]   f32,   VMEM  (b_ih + b_hh for gates i, g, o)
    out_ref : [B, H]    f32,   VMEM
    x0_ref  : [B, E]    f32,   VMEM scratch (gathered token-0 embeddings)
    """
    B, H = out_ref.shape

    # In-kernel embedding gather of token 0 for every batch row.  B is small
    # and static -> fully unrolled; each load is a dynamic index on the
    # leading (non-tiled) axis of the 3-D table.
    for b in range(B):
        x0_ref[pl.ds(b, 1), :] = emb_ref[ids_ref[b, 0]]

    # [B, 3H] = x0 @ W_pack + bias ;  h0 @ W_hh^T == 0 and is dropped.
    gates = (
        jnp.dot(x0_ref[...], w_ref[...], preferred_element_type=jnp.float32)
        + b_ref[...]
    )

    i_g = jax.nn.sigmoid(gates[:, 0 * H:1 * H])
    g_g = jnp.tanh(gates[:, 1 * H:2 * H])
    o_g = jax.nn.sigmoid(gates[:, 2 * H:3 * H])

    c1 = i_g * g_g                      # forget gate * c0 == 0, dropped
    out_ref[...] = o_g * jnp.tanh(c1)


def prepare_lstm_params(emb_weight, w_ih, w_hh, b_ih, b_hh):
    """One-time (init/weight-load time) packing -- keep OUT of the hot path.

    PyTorch gate order in w_ih / b_* is (i, f, g, o); the forget-gate columns
    multiply c0 == 0 so they are dropped.  w_hh drops out because h0 == 0.
    """
    del w_hh
    H = b_ih.shape[0] // 4
    w_t = jnp.asarray(w_ih, jnp.float32).T                               # [E, 4H]
    w_pack = jnp.concatenate(
        [w_t[:, 0 * H:1 * H], w_t[:, 2 * H:3 * H], w_t[:, 3 * H:4 * H]], axis=1
    )                                                                    # [E, 3H]
    bias = jnp.asarray(b_ih, jnp.float32) + jnp.asarray(b_hh, jnp.float32)
    b_pack = jnp.concatenate(
        [bias[0 * H:1 * H], bias[2 * H:3 * H], bias[3 * H:4 * H]]
    )[None, :]                                                           # [1, 3H]
    V, E = emb_weight.shape
    emb3 = jnp.asarray(emb_weight, jnp.float32).reshape(V, 1, E)         # [V, 1, E]
    return emb3, w_pack, b_pack


def lstm_forward(x_ids, x_len, prepared_params):
    """Hot path: a single fused pallas_call (gather + matmul + gate math)."""
    del x_len  # timestep 0 is never padding (pack_padded_sequence: len >= 1)
    emb3, w_pack, b_pack = prepared_params
    B, _L = x_ids.shape
    V, _, E = emb3.shape
    H = w_pack.shape[1] // 3

    ids = x_ids.astype(jnp.int32)  # no-op when the caller already passes int32

    cost = pl.CostEstimate(
        flops=2 * B * E * 3 * H + 6 * B * H,
        transcendentals=4 * B * H,
        bytes_accessed=(ids.size * 4 + emb3.size * 4 + w_pack.size * 4
                        + b_pack.size * 4 + B * H * 4),
    )

    # Note: for production batch sizes, pad B up to a multiple of 8 (and keep
    # H a multiple of 128, as here) so the [B, H] store stays an unmasked,
    # lane/sublane-dense vst.  On v7x with large B, add a "parallel" grid axis
    # over the batch to use both TensorCores; at B=4 a grid is pure overhead.
    return pl.pallas_call(
        _lstm_t0_kernel,
        out_shape=jax.ShapeDtypeStruct((B, H), jnp.float32),
        in_specs=[
            pl.BlockSpec(memory_space=pltpu.MemorySpace.SMEM),   # ids  [B, L]
            pl.BlockSpec(memory_space=pltpu.MemorySpace.VMEM),   # emb  [V, 1, E]
            pl.BlockSpec(memory_space=pltpu.MemorySpace.VMEM),   # W    [E, 3H]
            pl.BlockSpec(memory_space=pltpu.MemorySpace.VMEM),   # bias [1, 3H]
        ],
        out_specs=pl.BlockSpec(memory_space=pltpu.MemorySpace.VMEM),
        scratch_shapes=[pltpu.VMEM((B, E), jnp.float32)],
        cost_estimate=cost,
    )(ids, emb3, w_pack, b_pack)


if __name__ == "__main__":
    # small, deterministic setup
    vocab_size = 50
    sentence_length = 8      # L
    embedding_dim = 32       # E
    hidden_size = 128        # H
    batch = 4                # B

    key = jax.random.PRNGKey(0)
    k_emb, k_wih, k_whh, k_bih, k_bhh, k_ids = jax.random.split(key, 6)

    # frozen embedding table (stands in for `vector_embeddings`)
    emb_weight = jax.random.normal(k_emb, (vocab_size, embedding_dim), jnp.float32)

    # nn.LSTM default init: U(-1/sqrt(H), 1/sqrt(H)), gate order i, f, g, o
    bound = 1.0 / jnp.sqrt(jnp.float32(hidden_size))
    w_ih = jax.random.uniform(k_wih, (4 * hidden_size, embedding_dim), jnp.float32, -bound, bound)
    w_hh = jax.random.uniform(k_whh, (4 * hidden_size, hidden_size), jnp.float32, -bound, bound)
    b_ih = jax.random.uniform(k_bih, (4 * hidden_size,), jnp.float32, -bound, bound)
    b_hh = jax.random.uniform(k_bhh, (4 * hidden_size,), jnp.float32, -bound, bound)

    # inputs: token ids [B, L] and per-example lengths (all >= 1, unsorted OK)
    x_ids = jax.random.randint(k_ids, (batch, sentence_length), 0, vocab_size, jnp.int32)
    x_len = jnp.array([5, 8, 3, 1], dtype=jnp.int32)

    # one-time parameter packing (init time, NOT per forward call)
    prepared = prepare_lstm_params(emb_weight, w_ih, w_hh, b_ih, b_hh)
    prepared = jax.block_until_ready(prepared)

    fwd = jax.jit(lstm_forward)
    out = fwd(x_ids, x_len, prepared)
    jax.block_until_ready(out)

    # pure-JAX f32 reference of the same module semantics
    Hs = hidden_size
    x0_ref = jnp.take(emb_weight, x_ids[:, 0], axis=0)
    gates_ref = x0_ref @ w_ih.T + (b_ih + b_hh)[None, :]
    i_r = jax.nn.sigmoid(gates_ref[:, 0 * Hs:1 * Hs])
    g_r = jnp.tanh(gates_ref[:, 2 * Hs:3 * Hs])
    o_r = jax.nn.sigmoid(gates_ref[:, 3 * Hs:4 * Hs])
    ref = o_r * jnp.tanh(i_r * g_r)

    assert out.shape == (batch, hidden_size)
    assert bool(jnp.all(jnp.isfinite(out)))
    max_err = float(jnp.max(jnp.abs(out - ref)))
    assert max_err < 2e-3, f"mismatch vs reference: {max_err}"
    print("KERNEL_OK")
</pallas_src>

<mosaic_0001>
module attributes {stable_mosaic.version = 11 : i64} {
  func.func @_lstm_t0_kernel(%arg0: memref<4x8xi32, #tpu.memory_space<smem>>, %arg1: memref<50x1x32xf32, #tpu.memory_space<vmem>>, %arg2: memref<32x384xf32, #tpu.memory_space<vmem>>, %arg3: memref<1x384xf32, #tpu.memory_space<vmem>>, %arg4: memref<4x128xf32, #tpu.memory_space<vmem>>, %arg5: memref<4x32xf32, #tpu.memory_space<vmem>>) attributes {dimension_semantics = [], scalar_prefetch = 0 : i64, scratch_operands = 1 : i64, tpu.core_type = #tpu.core_type<tc>} {
    %c0 = arith.constant 0 : index
    %c0_0 = arith.constant 0 : index
    %0 = memref.load %arg0[%c0, %c0_0] : memref<4x8xi32, #tpu.memory_space<smem>>
    %1 = arith.index_cast %0 : i32 to index
    %c0_1 = arith.constant 0 : index
    %c0_2 = arith.constant 0 : index
    %2 = vector.load %arg1[%1, %c0_1, %c0_2] : memref<50x1x32xf32, #tpu.memory_space<vmem>>, vector<1x1x32xf32>
    %3 = vector.shape_cast %2 : vector<1x1x32xf32> to vector<1x32xf32>
    %c0_3 = arith.constant 0 : index
    %c0_4 = arith.constant 0 : index
    %4 = vector.load %arg5[%c0_3, %c0_4] : memref<4x32xf32, #tpu.memory_space<vmem>>, vector<1x32xf32>
    tpu.vector_store %arg5[%c0_3, %c0_4], %3 {strides = array<i32>} : memref<4x32xf32, #tpu.memory_space<vmem>>, vector<1x32xf32>,
    %c1 = arith.constant 1 : index
    %c0_5 = arith.constant 0 : index
    %5 = memref.load %arg0[%c1, %c0_5] : memref<4x8xi32, #tpu.memory_space<smem>>
    %6 = arith.index_cast %5 : i32 to index
    %c0_6 = arith.constant 0 : index
    %c0_7 = arith.constant 0 : index
    %7 = vector.load %arg1[%6, %c0_6, %c0_7] : memref<50x1x32xf32, #tpu.memory_space<vmem>>, vector<1x1x32xf32>
    %8 = vector.shape_cast %7 : vector<1x1x32xf32> to vector<1x32xf32>
    %c1_8 = arith.constant 1 : index
    %c0_9 = arith.constant 0 : index
    %9 = vector.load %arg5[%c1_8, %c0_9] : memref<4x32xf32, #tpu.memory_space<vmem>>, vector<1x32xf32>
    tpu.vector_store %arg5[%c1_8, %c0_9], %8 {strides = array<i32>} : memref<4x32xf32, #tpu.memory_space<vmem>>, vector<1x32xf32>,
    %c2 = arith.constant 2 : index
    %c0_10 = arith.constant 0 : index
    %10 = memref.load %arg0[%c2, %c0_10] : memref<4x8xi32, #tpu.memory_space<smem>>
    %11 = arith.index_cast %10 : i32 to index
    %c0_11 = arith.constant 0 : index
    %c0_12 = arith.constant 0 : index
    %12 = vector.load %arg1[%11, %c0_11, %c0_12] : memref<50x1x32xf32, #tpu.memory_space<vmem>>, vector<1x1x32xf32>
    %13 = vector.shape_cast %12 : vector<1x1x32xf32> to vector<1x32xf32>
    %c2_13 = arith.constant 2 : index
    %c0_14 = arith.constant 0 : index
    %14 = vector.load %arg5[%c2_13, %c0_14] : memref<4x32xf32, #tpu.memory_space<vmem>>, vector<1x32xf32>
    tpu.vector_store %arg5[%c2_13, %c0_14], %13 {strides = array<i32>} : memref<4x32xf32, #tpu.memory_space<vmem>>, vector<1x32xf32>,
    %c3 = arith.constant 3 : index
    %c0_15 = arith.constant 0 : index
    %15 = memref.load %arg0[%c3, %c0_15] : memref<4x8xi32, #tpu.memory_space<smem>>
    %16 = arith.index_cast %15 : i32 to index
    %c0_16 = arith.constant 0 : index
    %c0_17 = arith.constant 0 : index
    %17 = vector.load %arg1[%16, %c0_16, %c0_17] : memref<50x1x32xf32, #tpu.memory_space<vmem>>, vector<1x1x32xf32>
    %18 = vector.shape_cast %17 : vector<1x1x32xf32> to vector<1x32xf32>
    %c3_18 = arith.constant 3 : index
    %c0_19 = arith.constant 0 : index
    %19 = vector.load %arg5[%c3_18, %c0_19] : memref<4x32xf32, #tpu.memory_space<vmem>>, vector<1x32xf32>
    tpu.vector_store %arg5[%c3_18, %c0_19], %18 {strides = array<i32>} : memref<4x32xf32, #tpu.memory_space<vmem>>, vector<1x32xf32>,
    %c0_20 = arith.constant 0 : index
    %c0_21 = arith.constant 0 : index
    %20 = vector.load %arg5[%c0_20, %c0_21] : memref<4x32xf32, #tpu.memory_space<vmem>>, vector<4x32xf32>
    %c0_22 = arith.constant 0 : index
    %c0_23 = arith.constant 0 : index
    %21 = vector.load %arg2[%c0_22, %c0_23] : memref<32x384xf32, #tpu.memory_space<vmem>>, vector<32x384xf32>
    %cst = arith.constant dense<0.000000e+00> : vector<4x384xf32>
    %22 = tpu.matmul %20, %21, %cst {dimension_numbers = #tpu.dot_dimension_numbers<[1], [0], [0], [1], [0, 0, 1, 1], [], []>} : vector<4x32xf32>, vector<32x384xf32>, vector<4x384xf32> -> vector<4x384xf32>
    %c0_24 = arith.constant 0 : index
    %c0_25 = arith.constant 0 : index
    %23 = vector.load %arg3[%c0_24, %c0_25] : memref<1x384xf32, #tpu.memory_space<vmem>>, vector<1x384xf32>
    %24 = vector.broadcast %23 : vector<1x384xf32> to vector<4x384xf32>
    %25 = arith.addf %22, %24 : vector<4x384xf32>
    %26 = vector.extract_strided_slice %25 {offsets = [0, 0], sizes = [4, 128], strides = [1, 1]} : vector<4x384xf32> to vector<4x128xf32>
    %27 = arith.negf %26 : vector<4x128xf32>
    %28 = math.exp %27 : vector<4x128xf32>
    %cst_26 = arith.constant 1.000000e+00 : f32
    %29 = vector.broadcast %cst_26 : f32 to vector<4x128xf32>
    %30 = arith.addf %29, %28 : vector<4x128xf32>
    %31 = arith.divf %29, %30 : vector<4x128xf32>
    %32 = vector.extract_strided_slice %25 {offsets = [0, 128], sizes = [4, 128], strides = [1, 1]} : vector<4x384xf32> to vector<4x128xf32>
    %33 = math.tanh %32 : vector<4x128xf32>
    %34 = vector.extract_strided_slice %25 {offsets = [0, 256], sizes = [4, 128], strides = [1, 1]} : vector<4x384xf32> to vector<4x128xf32>
    %35 = arith.negf %34 : vector<4x128xf32>
    %36 = math.exp %35 : vector<4x128xf32>
    %cst_27 = arith.constant 1.000000e+00 : f32
    %37 = vector.broadcast %cst_27 : f32 to vector<4x128xf32>
    %38 = arith.addf %37, %36 : vector<4x128xf32>
    %39 = arith.divf %37, %38 : vector<4x128xf32>
    %40 = arith.mulf %31, %33 : vector<4x128xf32>
    %41 = math.tanh %40 : vector<4x128xf32>
    %42 = arith.mulf %39, %41 : vector<4x128xf32>
    %c0_28 = arith.constant 0 : index
    %c0_29 = arith.constant 0 : index
    %43 = vector.load %arg4[%c0_28, %c0_29] : memref<4x128xf32, #tpu.memory_space<vmem>>, vector<4x128xf32>
    tpu.vector_store %arg4[%c0_28, %c0_29], %42 {strides = array<i32>} : memref<4x128xf32, #tpu.memory_space<vmem>>, vector<4x128xf32>,
    return
  }
}

</mosaic_0001>

<llo_original>
// kernel: lstm_forward.1
$region0: #{lstm_forward.1}
  #allocation0 [shape = 'u32[]', space=smem, size = 0x4, offset = 0x4, fixed_abs, tag = 'smem constant byte address 0x4 - core index']
  #allocation1 [shape = 'u32[144,128]{1,0:T(1,128)}', space=vmem, size = 0x12000, scoped, tag = 'internal scratch']
  #allocation2 [shape = 'f32[4,32]{1,0:T(4,128)}', space=vmem, size = 0x800, scoped, tag = 'scratch operand']
  %s0 = inlined_call_operand.vmem [shape: s32[4,8], index: 0, kind: input, shape index: {}]
  %s1 = inlined_call_operand.vmem [shape: f32[50,1,32], index: 1, kind: input, shape index: {}]
  %s2 = inlined_call_operand.hbm [shape: f32[32,384], index: 2, kind: input, shape index: {}]
  %s3 = inlined_call_operand.vmem [shape: f32[1,384], index: 3, kind: input, shape index: {}]
  %s4 = inlined_call_operand.hbm [shape: f32[4,128], index: 4, kind: output, shape index: {}]
  %s5 = sld [smem:[#allocation0]]
  $region34: #{lstm_forward.1} parent=0
    _
  %s7 = ssub.s32 1, %s5
  %s8 = scalar_select 0, %s7, %s5
  $region1: #{lstm_forward.1} parent=0
    #allocation3 [shape = 'u8[2048]{0}', space=smem, size = 0x800, scoped, tag = 'input window, operand 0, single buffered']
    #allocation4 [shape = 's32[1]{0}', space=sflag, size = 0x4, scoped, tag = 'scoped memory for lstm_forward.1']
    #allocation5 [shape = 's32[1]{0}', space=sflag, size = 0x4, scoped, tag = 'scoped memory for lstm_forward.1']
    #allocation6 [shape = 's32[1]{0}', space=sflag, size = 0x4, scoped, tag = 'scoped memory for lstm_forward.1']
    #allocation7 [shape = 'u8[49152]{0}', space=vmem, size = 0xc000, scoped, tag = 'input window, operand 2, single buffered']
    #allocation8 [shape = 'u8[2048]{0}', space=vmem, size = 0x800, scoped, tag = 'output window, operand 0, single buffered']
    %9 = vsyncpa [#allocation6], 0
    %10 = vsyncpa [#allocation4], 0
    %11 = vsyncpa [#allocation5], 0
    // Predicated region
    $region2: #{lstm_forward.1} parent=1 // pred_check
      _
    $region3: #{lstm_forward.1} parent=1 // pred_check_branch
      %13 = sbr.rel (0) target = $region5
    $region4: #{lstm_forward.1} parent=1 // pred_region
      %s15 = ssub.s32 64, 64
      %16 = vsyncadd [#allocation6], %s15
      %s18 = sshll.u32 %s0, 4
      %s19 = int_to_ptr.vmem [resolvable:$true] %s18
      %21 = dma.vmem_to_smem %s19, 64, [#allocation3], [#allocation6]
    $region5: #{lstm_forward.1} parent=1 // pred_fallthru
      _
    // Predicated region
    $region6: #{lstm_forward.1} parent=1 // pred_check
      _
    $region7: #{lstm_forward.1} parent=1 // pred_check_branch
      %23 = sbr.rel (0) target = $region9
    $region8: #{lstm_forward.1} parent=1 // pred_region
      _
    $region9: #{lstm_forward.1} parent=1 // pred_fallthru
      _
    // Predicated region
    $region10: #{lstm_forward.1} parent=1 // pred_check
      _
    $region11: #{lstm_forward.1} parent=1 // pred_check_branch
      %25 = sbr.rel (0) target = $region13
    $region12: #{lstm_forward.1} parent=1 // pred_region
      %s27 = ssub.s32 1536, 1536
      %28 = vsyncadd [#allocation4], %s27
      %s29 = sshll.u32 [#allocation7], 4
      %s30 = int_to_ptr.vmem [resolvable:$true] %s29
      %35 = dma.hbm_to_vmem [thread:$0]  %s2, 1536, %s30, [#allocation4], 384, 384, 24
    $region13: #{lstm_forward.1} parent=1 // pred_fallthru
      _
    // Predicated region
    $region14: #{lstm_forward.1} parent=1 // pred_check
      _
    $region15: #{lstm_forward.1} parent=1 // pred_check_branch
      %37 = sbr.rel (0) target = $region17
    $region16: #{lstm_forward.1} parent=1 // pred_region
      _
    $region17: #{lstm_forward.1} parent=1 // pred_fallthru
      _
    // Predicated region
    $region18: #{lstm_forward.1} parent=1 // pred_check
      _
    $region19: #{lstm_forward.1} parent=1 // pred_check_branch
      %39 = sbr.rel (0) target = $region21
    $region20: #{lstm_forward.1} parent=1 // pred_region
      %40 = dma.done [#allocation6], 64
    $region21: #{lstm_forward.1} parent=1 // pred_fallthru
      _
    // Predicated region
    $region22: #{lstm_forward.1} parent=1 // pred_check
      _
    $region23: #{lstm_forward.1} parent=1 // pred_check_branch
      %42 = sbr.rel (0) target = $region25
    $region24: #{lstm_forward.1} parent=1 // pred_region
      %43 = dma.done [#allocation4], 1536
    $region25: #{lstm_forward.1} parent=1 // pred_fallthru
      _
    %44 = sfence
    %s45 = sld [smem:[#allocation3]]
    %s46 = scalar_lea.vmem %s1, %s45
    %v47 = vld [vmem:[%s46] sm:$0x1]
    %vm48 = vcmask 253952
    %49 = vst.msk [vmem:[#allocation2] sm:$0x1] %vm48, %v47
    %s50 = sld [smem:[#allocation3 + $0x80]]
    %s51 = scalar_lea.vmem %s1, %s50
    %v52 = vld [vmem:[%s51] sm:$0x1]
    %53 = vst.msk [vmem:[#allocation2 + $0x1] sm:$0x1] %vm48, %v52
    %s54 = sld [smem:[#allocation3 + $0x100]]
    %s55 = scalar_lea.vmem %s1, %s54
    %v56 = vld [vmem:[%s55] sm:$0x1]
    %57 = vst.msk [vmem:[#allocation2 + $0x2] sm:$0x1] %vm48, %v56
    %s58 = sld [smem:[#allocation3 + $0x180]]
    %s59 = scalar_lea.vmem %s1, %s58
    %v60 = vld [vmem:[%s59] sm:$0x1]
    %61 = vst.msk [vmem:[#allocation2 + $0x3] sm:$0x1] %vm48, %v60
    %v62 = vld [vmem:[#allocation2] sm:$0xf]
    %v63 = vld [vmem:[#allocation7] sm:$0xff]
    %v64 = vld [vmem:[#allocation7 + $0x8] sm:$0xff]
    %v65 = vld [vmem:[#allocation7 + $0x10] sm:$0xff]
    %v66 = vld [vmem:[#allocation7 + $0x18] sm:$0xff]
    %v67 = vld [vmem:[#allocation7 + $0x20] sm:$0xff]
    %v68 = vld [vmem:[#allocation7 + $0x28] sm:$0xff]
    %v69 = vld [vmem:[#allocation7 + $0x30] sm:$0xff]
    %v70 = vld [vmem:[#allocation7 + $0x38] sm:$0xff]
    %v71 = vld [vmem:[#allocation7 + $0x40] sm:$0xff]
    %v72 = vld [vmem:[#allocation7 + $0x48] sm:$0xff]
    %v73 = vld [vmem:[#allocation7 + $0x50] sm:$0xff]
    %v74 = vld [vmem:[#allocation7 + $0x58] sm:$0xff]
    %v75 = vld [vmem:[%s3] sm:$0x7]
    %v77 = vlaneseq
    %v78 = vshrl.u32 %v77, 7
    %v79 = vsub.s32 0, %v78
    %v80 = vrot.slane %v75, %v79
    %v81 = vlaneseq
    %v82 = vshrl.u32 %v81, 7
    %v83 = vsub.s32 1, %v82
    %v84 = vrot.slane %v75, %v83
    %v85 = vlaneseq
    %v86 = vshrl.u32 %v85, 7
    %v87 = vsub.s32 2, %v86
    %v88 = vrot.slane %v75, %v87
    %vm92 = vcmask 261120
    %v94 = vsel %vm92, %v62, 0
    %96 = vmatprep.subr.mxu0 0.0
    %97 = vmatpush1.msra.mxu0 0.0
    %98 = vmatprep.subr.mxu0 0.0
    %99 = vmatpush1.msra.mxu0 0.0
    %100 = vmatprep.subr.mxu0 0.0
    %101 = vmatpush1.msra.mxu0 0.0
    %102 = vmatprep.subr.mxu0 0.0
    %103 = vmatpush1.msra.mxu0 0.0
    %104 = vmatprep.subr.mxu0 0.0
    %105 = vmatpush1.msra.mxu0 0.0
    %106 = vmatprep.subr.mxu0 0.0
    %107 = vmatpush1.msra.mxu0 0.0
    %108 = vmatprep.subr.mxu0 0.0
    %109 = vmatpush1.msra.mxu0 0.0
    %110 = vmatprep.subr.mxu0 0.0
    %111 = vmatpush1.msra.mxu0 0.0
    %112 = vmatprep.subr.mxu0 0.0
    %113 = vmatpush1.msra.mxu0 0.0
    %114 = vmatprep.subr.mxu0 0.0
    %115 = vmatpush1.msra.mxu0 0.0
    %116 = vmatprep.subr.mxu0 0.0
    %117 = vmatpush1.msra.mxu0 0.0
    %118 = vmatprep.subr.mxu0 0.0
    %119 = vmatpush1.msra.mxu0 0.0
    %120 = vmatprep.subr.mxu0 %v73
    %121 = vmatpush1.msra.mxu0 %v72
    %122 = vmatprep.subr.mxu0 %v70
    %123 = vmatpush1.msra.mxu0 %v69
    %124 = vmatprep.subr.mxu0 %v67
    %125 = vmatpush1.msra.mxu0 %v66
    %126 = vmatprep.subr.mxu0 %v64
    %127 = vmatpush1.msra.mxu0 %v63
    %128 = vmatprep.subr.mxu0 0.0
    %129 = vmatpush2.msra.mxu0 0.0
    %130 = vmatprep.subr.mxu0 0.0
    %131 = vmatpush2.msra.mxu0 0.0
    %132 = vmatprep.subr.mxu0 0.0
    %133 = vmatpush2.msra.mxu0 0.0
    %134 = vmatprep.subr.mxu0 0.0
    %135 = vmatpush2.msra.mxu0 0.0
    %136 = vmatprep.subr.mxu0 0.0
    %137 = vmatpush2.msra.mxu0 0.0
    %138 = vmatprep.subr.mxu0 0.0
    %139 = vmatpush2.msra.mxu0 0.0
    %140 = vmatprep.subr.mxu0 0.0
    %141 = vmatpush2.msra.mxu0 0.0
    %142 = vmatprep.subr.mxu0 0.0
    %143 = vmatpush2.msra.mxu0 0.0
    %144 = vmatprep.subr.mxu0 0.0
    %145 = vmatpush2.msra.mxu0 0.0
    %146 = vmatprep.subr.mxu0 0.0
    %147 = vmatpush2.msra.mxu0 0.0
    %148 = vmatprep.subr.mxu0 0.0
    %149 = vmatpush2.msra.mxu0 0.0
    %150 = vmatprep.subr.mxu0 0.0
    %151 = vmatpush2.msra.mxu0 0.0
    %152 = vmatprep.subr.mxu0 0.0
    %153 = vmatpush2.msra.mxu0 0.0
    %154 = vmatprep.subr.mxu0 0.0
    %155 = vmatpush2.msra.mxu0 0.0
    %156 = vmatprep.subr.mxu0 0.0
    %157 = vmatpush2.msra.mxu0 0.0
    %158 = vmatprep.subr.mxu0 0.0
    %159 = vmatpush2.msra.mxu0 0.0
    %160 = vmatprep.mubr.f32.mxu0 0.0
    %161 = vmatmul.mubr.f32.gmra.mxu0 %v94
    %v162 = vpop.f32.mrf.mxu0
    %v163 = vadd.f32 %v80, %v162
    %v164 = vpop.f32.mrf.mxu0
    %v165 = vadd.f32 %v84, %v164
    %166 = vdwg.mxu0
    %167 = vmatprep.subr.mxu0 0.0
    %168 = vmatpush1.msra.mxu0 0.0
    %169 = vmatprep.subr.mxu0 0.0
    %170 = vmatpush1.msra.mxu0 0.0
    %171 = vmatprep.subr.mxu0 0.0
    %172 = vmatpush1.msra.mxu0 0.0
    %173 = vmatprep.subr.mxu0 0.0
    %174 = vmatpush1.msra.mxu0 0.0
    %175 = vmatprep.subr.mxu0 0.0
    %176 = vmatpush1.msra.mxu0 0.0
    %177 = vmatprep.subr.mxu0 0.0
    %178 = vmatpush1.msra.mxu0 0.0
    %179 = vmatprep.subr.mxu0 0.0
    %180 = vmatpush1.msra.mxu0 0.0
    %181 = vmatprep.subr.mxu0 0.0
    %182 = vmatpush1.msra.mxu0 0.0
    %183 = vmatprep.subr.mxu0 0.0
    %184 = vmatpush1.msra.mxu0 0.0
    %185 = vmatprep.subr.mxu0 0.0
    %186 = vmatpush1.msra.mxu0 0.0
    %187 = vmatprep.subr.mxu0 0.0
    %188 = vmatpush1.msra.mxu0 0.0
    %189 = vmatprep.subr.mxu0 0.0
    %190 = vmatpush1.msra.mxu0 0.0
    %191 = vmatprep.subr.mxu0 0.0
    %192 = vmatpush1.msra.mxu0 %v74
    %193 = vmatprep.subr.mxu0 0.0
    %194 = vmatpush1.msra.mxu0 %v71
    %195 = vmatprep.subr.mxu0 0.0
    %196 = vmatpush1.msra.mxu0 %v68
    %197 = vmatprep.subr.mxu0 0.0
    %198 = vmatpush1.msra.mxu0 %v65
    %199 = vmatprep.subr.mxu0 0.0
    %200 = vmatpush2.msra.mxu0 0.0
    %201 = vmatprep.subr.mxu0 0.0
    %202 = vmatpush2.msra.mxu0 0.0
    %203 = vmatprep.subr.mxu0 0.0
    %204 = vmatpush2.msra.mxu0 0.0
    %205 = vmatprep.subr.mxu0 0.0
    %206 = vmatpush2.msra.mxu0 0.0
    %207 = vmatprep.subr.mxu0 0.0
    %208 = vmatpush2.msra.mxu0 0.0
    %209 = vmatprep.subr.mxu0 0.0
    %210 = vmatpush2.msra.mxu0 0.0
    %211 = vmatprep.subr.mxu0 0.0
    %212 = vmatpush2.msra.mxu0 0.0
    %213 = vmatprep.subr.mxu0 0.0
    %214 = vmatpush2.msra.mxu0 0.0
    %215 = vmatprep.subr.mxu0 0.0
    %216 = vmatpush2.msra.mxu0 0.0
    %217 = vmatprep.subr.mxu0 0.0
    %218 = vmatpush2.msra.mxu0 0.0
    %219 = vmatprep.subr.mxu0 0.0
    %220 = vmatpush2.msra.mxu0 0.0
    %221 = vmatprep.subr.mxu0 0.0
    %222 = vmatpush2.msra.mxu0 0.0
    %223 = vmatprep.subr.mxu0 0.0
    %224 = vmatpush2.msra.mxu0 0.0
    %225 = vmatprep.subr.mxu0 0.0
    %226 = vmatpush2.msra.mxu0 0.0
    %227 = vmatprep.subr.mxu0 0.0
    %228 = vmatpush2.msra.mxu0 0.0
    %229 = vmatprep.subr.mxu0 0.0
    %230 = vmatpush2.msra.mxu0 0.0
    %231 = vmatprep.mubr.f32.mxu0 0.0
    %232 = vmatmul.mubr.f32.gmra.mxu0 %v94
    %v233 = vpop.f32.mrf.mxu0
    %v234 = vadd.f32 %v88, %v233
    %v235 = vpop.f32.mrf.mxu0
    %236 = vdwg.mxu0
    %v237 = vxor.u32 %v163, 2147483648
    %v238 = vmul.f32 %v237, 1.442695
    %v239 = vpow.pop %v238
    %v240 = vadd.f32 %v239, 1.0
    %v241 = vrcp.pop %v240
    %v242 = vmul.f32 1.0, %v241
    %v243 = vtanh.pop %v165
    %v244 = vxor.u32 %v234, 2147483648
    %v245 = vmul.f32 %v244, 1.442695
    %v246 = vpow.pop %v245
    %v247 = vadd.f32 %v246, 1.0
    %v248 = vrcp.pop %v247
    %v249 = vmul.f32 1.0, %v248
    %v250 = vmul.f32 %v242, %v243
    %v251 = vtanh.pop %v250
    %v252 = vmul.f32 %v249, %v251
    %253 = vst [vmem:[#allocation8] sm:$0xf] %v252
    // Predicated region
    $region26: #{lstm_forward.1} parent=1 // pred_check
      _
    $region27: #{lstm_forward.1} parent=1 // pred_check_branch
      %255 = sbr.rel (0) target = $region29
    $region28: #{lstm_forward.1} parent=1 // pred_region
      %s257 = ssub.s32 64, 64
      %258 = vsyncadd [#allocation5], %s257
      %s260 = sshll.u32 [#allocation8], 4
      %s261 = int_to_ptr.vmem [resolvable:$true] %s260
      %263 = dma.vmem_to_hbm [thread:$0]  %s261, 64, %s4, [#allocation5]
    $region29: #{lstm_forward.1} parent=1 // pred_fallthru
      _
    // Predicated region
    $region30: #{lstm_forward.1} parent=1 // pred_check
      _
    $region31: #{lstm_forward.1} parent=1 // pred_check_branch
      %265 = sbr.rel (0) target = $region33
    $region32: #{lstm_forward.1} parent=1 // pred_region
      %266 = dma.done [#allocation5], 64
    $region33: #{lstm_forward.1} parent=1 // pred_fallthru
      _
    %267 = vsyncpa [#allocation4], 1
    %268 = vsyncpa [#allocation5], 1
    %269 = vsyncpa [#allocation6], 1

</llo_original>
